<compile_context>
chip_gen: v6e
topology: v6e:2x2x1
jax: 0.10.0
libtpu: 0.0.40
codegen_flags: <defaults>
</compile_context>

<pallas_src>
import functools
import math

import jax
import jax.numpy as jnp
import numpy as np
from jax.experimental import pallas as pl
from jax.experimental.pallas import tpu as pltpu

_LANES = 128


def _scaled_hermite(s, u, m, c):
    """Returns c * H_m(s) (physicists' Hermite) in Horner form over u = s*s.

    `c` and all polynomial coefficients are trace-time Python floats, so they
    fold into vector immediates.  m == 0 is handled by the caller (H_0 == 1).
    """
    if m < 0 or m > 5:
        raise ValueError("ord must be in the range 0 - 5 inclusive.")
    if m == 1:
        return (2.0 * c) * s
    if m == 2:
        return (4.0 * c) * u - (2.0 * c)
    if m == 3:
        return s * ((8.0 * c) * u - (12.0 * c))
    if m == 4:
        return ((16.0 * c) * u - (48.0 * c)) * u + (12.0 * c)
    # m == 5
    return s * (((32.0 * c) * u - (160.0 * c)) * u + (120.0 * c))


def _gaussian_basis2d_kernel(x_ref, y_ref, o_ref, *, max_ord, sigma):
    # All scalar math happens at trace time on Python floats.
    sigma = float(sigma)
    inv_2sigma2 = 1.0 / (2.0 * sigma * sigma)
    inv_sigma_sqrt2 = 1.0 / (sigma * math.sqrt(2.0))
    gauss_scale = 1.0 / (math.sqrt(2.0 * math.pi) * sigma)
    # Per-order constant: sign * 1 / sqrt(sigma)**m.
    c = [((-1.0) ** m) / (math.sqrt(sigma) ** m) for m in range(max_ord + 1)]

    x = x_ref[...]
    y = y_ref[...]

    # ---- y axis: precompute all orders once (kept resident). ----
    window_y = gauss_scale * jnp.exp(-(y * y) * inv_2sigma2)
    s_y = y * inv_sigma_sqrt2
    u_y = s_y * s_y
    yders = [window_y]
    for m in range(1, max_ord + 1):
        yders.append(_scaled_hermite(s_y, u_y, m, c[m]) * window_y)

    # ---- x axis: window/s/u once; derivatives one order at a time. ----
    window_x = gauss_scale * jnp.exp(-(x * x) * inv_2sigma2)
    s_x = x * inv_sigma_sqrt2
    u_x = s_x * s_x

    b = 0
    for x_ord in range(max_ord + 1):
        if x_ord == 0:
            xd = window_x
        else:
            xd = _scaled_hermite(s_x, u_x, x_ord, c[x_ord]) * window_x
        for y_ord in range(max_ord + 1):
            o_ref[b] = (xd * yders[y_ord]).astype(o_ref.dtype)
            b += 1


def _pick_tiling(num_basis, max_ord, num_rows_padded, sub, out_itemsize):
    """Rows of 128 lanes per grid step + VMEM limit, sized per TPU generation."""
    try:
        vmem_cap = int(pltpu.get_tpu_info().vmem_capacity_bytes)
    except Exception:
        vmem_cap = 64 * 1024 * 1024  # conservative (v7x-sized) fallback
    # v5e/v6e (128 MiB VMEM): 64 MiB scoped limit; v7x (64 MiB): 48 MiB.
    vmem_limit = int(min(64 * 1024 * 1024, (vmem_cap * 3) // 4))

    # Per-row (128 lanes) VMEM working-set bytes:
    #   double-buffered output block + 2 double-buffered f32 input blocks
    #   + ~(max_ord + 7) live full-tile f32 temporaries in the body.
    row_bytes = (2 * num_basis * out_itemsize + 2 * 2 * 4 + (max_ord + 7) * 4) * _LANES
    budget = (vmem_limit * 17) // 20  # ~85% of the scoped limit
    rows_fit = budget // row_bytes

    # Target ~8-12 MiB output blocks (bigger on the 128 MiB-VMEM chips) to
    # amortize the ~0.35 us per-step overhead at the HBM roofline.
    target_out_bytes = (12 if vmem_cap >= 96 * 1024 * 1024 else 8) * 1024 * 1024
    rows_target = target_out_bytes // (num_basis * _LANES * out_itemsize)

    rows = max(sub, min(int(rows_fit), int(rows_target), 2048))
    rows = (rows // sub) * sub

    # Keep >= 2 grid steps so the "parallel" axis load-balances across the two
    # TensorCores on v7x (free on 1-TC v5e/v6e).
    if num_rows_padded <= 2 * rows:
        half = pl.cdiv(num_rows_padded, 2)
        rows = max(sub, ((half + sub - 1) // sub) * sub)
    return rows, vmem_limit


def gaussian_basis2d(x, y, sigma, max_ord, out_dtype=jnp.float32):
    """x, y: same-shape float grids; sigma: Python scalar.

    Returns [B, *x.shape] with B = (max_ord + 1)**2, basis maps stacked in
    (x_ord, y_ord) row-major order — matching torch.stack(basis, dim=0).
    """
    assert x.shape == y.shape
    orig_shape = x.shape
    B = (max_ord + 1) ** 2
    P = int(np.prod(orig_shape))
    out_dtype = jnp.dtype(out_dtype)

    # Lane-dense layout: flatten pixels and view as (rows, 128).  Pad rows only
    # up to the sublane multiple; Pallas masks the partial trailing grid block.
    sub = 8 if out_dtype.itemsize >= 4 else 16
    R = pl.cdiv(P, _LANES)
    R_pad = ((R + sub - 1) // sub) * sub
    P_pad = R_pad * _LANES

    rows_per_tile, vmem_limit = _pick_tiling(B, max_ord, R_pad, sub, out_dtype.itemsize)

    def to_rows(t):
        t = jnp.ravel(t).astype(jnp.float32)
        if P_pad != P:
            t = jnp.pad(t, (0, P_pad - P))
        return t.reshape(R_pad, _LANES)

    x2 = to_rows(x)
    y2 = to_rows(y)

    kernel = functools.partial(
        _gaussian_basis2d_kernel, max_ord=max_ord, sigma=float(sigma)
    )

    out = pl.pallas_call(
        kernel,
        out_shape=jax.ShapeDtypeStruct((B, R_pad, _LANES), out_dtype),
        grid=(pl.cdiv(R_pad, rows_per_tile),),
        in_specs=[
            pl.BlockSpec((rows_per_tile, _LANES), lambda i: (i, 0)),
            pl.BlockSpec((rows_per_tile, _LANES), lambda i: (i, 0)),
        ],
        out_specs=pl.BlockSpec((B, rows_per_tile, _LANES), lambda i: (0, i, 0)),
        compiler_params=pltpu.CompilerParams(
            dimension_semantics=("parallel",),
            vmem_limit_bytes=vmem_limit,
        ),
    )(x2, y2)

    if P_pad == P:
        # Free view — no extra HBM pass.
        return out.reshape((B,) + orig_shape)
    return out.reshape(B, P_pad)[:, :P].reshape((B,) + orig_shape)


# ----------------------------- reference ------------------------------------

def _hermite_ref(t, ord_):
    if ord_ == 0:
        return jnp.ones_like(t)
    elif ord_ == 1:
        return 2.0 * t
    elif ord_ == 2:
        return 4.0 * t ** 2 - 2.0
    elif ord_ == 3:
        return 8.0 * t ** 3 - 12.0 * t
    elif ord_ == 4:
        return 16.0 * t ** 4 - 48.0 * t ** 2 + 12.0
    elif ord_ == 5:
        return 32.0 * t ** 5 - 160.0 * t ** 3 + 120.0 * t
    raise ValueError("ord must be in the range 0 - 5 inclusive.")


def _reference(x, y, sigma, max_ord):
    """Pure-JAX reference mirroring the PyTorch module."""
    def gaussian1d(t, s):
        return (1.0 / (np.sqrt(2 * np.pi) * s)) * jnp.exp(-t ** 2 / (2 * s ** 2))

    def derivative1d(t, s, m):
        sign = (-1) ** m
        scale = 1.0 / (np.sqrt(s) ** m)
        herm = _hermite_ref(t / (s * np.sqrt(2)), m)
        return sign * scale * herm * gaussian1d(t, s)

    basis = []
    for x_ord in range(max_ord + 1):
        for y_ord in range(max_ord + 1):
            basis.append(derivative1d(x, sigma, x_ord) * derivative1d(y, sigma, y_ord))
    return jnp.stack(basis, axis=0)


if __name__ == "__main__":
    key = jax.random.PRNGKey(0)
    kx, ky, kx2, ky2, kx3, ky3 = jax.random.split(key, 6)

    # Case 1: max_ord=2 (B = 9), 16x16 grid — exercises the padded-rows path.
    sigma = 1.5
    x = jax.random.uniform(kx, (16, 16), dtype=jnp.float32, minval=-3.0, maxval=3.0)
    y = jax.random.uniform(ky, (16, 16), dtype=jnp.float32, minval=-3.0, maxval=3.0)
    out = jax.block_until_ready(gaussian_basis2d(x, y, sigma, max_ord=2))
    ref = _reference(x, y, sigma, max_ord=2)
    np.testing.assert_allclose(np.asarray(out), np.asarray(ref), rtol=1e-5, atol=1e-6)

    # Case 2: max_ord=5 (B = 36), 24x24 grid — exercises all Hermite orders.
    sigma2 = 2.0
    x2 = jax.random.uniform(kx2, (24, 24), dtype=jnp.float32, minval=-4.0, maxval=4.0)
    y2 = jax.random.uniform(ky2, (24, 24), dtype=jnp.float32, minval=-4.0, maxval=4.0)
    out2 = jax.block_until_ready(gaussian_basis2d(x2, y2, sigma2, max_ord=5))
    ref2 = _reference(x2, y2, sigma2, max_ord=5)
    np.testing.assert_allclose(np.asarray(out2), np.asarray(ref2), rtol=1e-5, atol=1e-6)

    # Case 3: max_ord=1 (B = 4), 32x32 grid (P = 1024) — zero-padding path,
    # output reshape is a free view (no post-kernel slice).
    sigma3 = 1.0
    x3 = jax.random.uniform(kx3, (32, 32), dtype=jnp.float32, minval=-3.0, maxval=3.0)
    y3 = jax.random.uniform(ky3, (32, 32), dtype=jnp.float32, minval=-3.0, maxval=3.0)
    out3 = jax.block_until_ready(gaussian_basis2d(x3, y3, sigma3, max_ord=1))
    ref3 = _reference(x3, y3, sigma3, max_ord=1)
    np.testing.assert_allclose(np.asarray(out3), np.asarray(ref3), rtol=1e-5, atol=1e-6)

    # Case 4: bfloat16 output path (halved output HBM traffic), loose tolerance.
    out4 = jax.block_until_ready(
        gaussian_basis2d(x, y, sigma, max_ord=3, out_dtype=jnp.bfloat16)
    )
    ref4 = _reference(x, y, sigma, max_ord=3)
    np.testing.assert_allclose(
        np.asarray(out4.astype(jnp.float32)), np.asarray(ref4), rtol=2e-2, atol=1e-4
    )

    print("KERNEL_OK")
</pallas_src>

<mosaic_0001>
module attributes {stable_mosaic.version = 11 : i64} {
  func.func @_gaussian_basis2d_kernel(%arg0: i32, %arg1: memref<8x128xf32, #tpu.memory_space<vmem>>, %arg2: memref<8x128xf32, #tpu.memory_space<vmem>>, %arg3: memref<9x8x128xf32, #tpu.memory_space<vmem>>) attributes {dimension_semantics = [#tpu.dimension_semantics<parallel>], iteration_bounds = array<i64: 1>, scalar_prefetch = 0 : i64, scratch_operands = 0 : i64, tpu.core_type = #tpu.core_type<tc>, window_params = [{transform_indices = @transform_0, window_bounds = array<i64: 8, 128>}, {transform_indices = @transform_1, window_bounds = array<i64: 8, 128>}, {transform_indices = @transform_2, window_bounds = array<i64: 9, 8, 128>}]} {
    %c0 = arith.constant 0 : index
    %c0_0 = arith.constant 0 : index
    %0 = vector.load %arg1[%c0, %c0_0] : memref<8x128xf32, #tpu.memory_space<vmem>>, vector<8x128xf32>
    %c0_1 = arith.constant 0 : index
    %c0_2 = arith.constant 0 : index
    %1 = vector.load %arg2[%c0_1, %c0_2] : memref<8x128xf32, #tpu.memory_space<vmem>>, vector<8x128xf32>
    %2 = arith.mulf %1, %1 : vector<8x128xf32>
    %cst = arith.constant 0.000000e+00 : f32
    %3 = vector.broadcast %cst : f32 to vector<8x128xf32>
    %4 = arith.subf %3, %2 : vector<8x128xf32>
    %cst_3 = arith.constant 0.222222224 : f32
    %5 = vector.broadcast %cst_3 : f32 to vector<8x128xf32>
    %6 = arith.mulf %4, %5 : vector<8x128xf32>
    %7 = math.exp %6 : vector<8x128xf32>
    %cst_4 = arith.constant 0.265961528 : f32
    %8 = vector.broadcast %cst_4 : f32 to vector<8x128xf32>
    %9 = arith.mulf %8, %7 : vector<8x128xf32>
    %cst_5 = arith.constant 0.471404523 : f32
    %10 = vector.broadcast %cst_5 : f32 to vector<8x128xf32>
    %11 = arith.mulf %1, %10 : vector<8x128xf32>
    %12 = arith.mulf %11, %11 : vector<8x128xf32>
    %cst_6 = arith.constant -1.63299322 : f32
    %13 = vector.broadcast %cst_6 : f32 to vector<8x128xf32>
    %14 = arith.mulf %13, %11 : vector<8x128xf32>
    %15 = arith.mulf %14, %9 : vector<8x128xf32>
    %cst_7 = arith.constant 2.66666675 : f32
    %16 = vector.broadcast %cst_7 : f32 to vector<8x128xf32>
    %17 = arith.mulf %16, %12 : vector<8x128xf32>
    %cst_8 = arith.constant 1.33333337 : f32
    %18 = vector.broadcast %cst_8 : f32 to vector<8x128xf32>
    %19 = arith.subf %17, %18 : vector<8x128xf32>
    %20 = arith.mulf %19, %9 : vector<8x128xf32>
    %21 = arith.mulf %0, %0 : vector<8x128xf32>
    %cst_9 = arith.constant 0.000000e+00 : f32
    %22 = vector.broadcast %cst_9 : f32 to vector<8x128xf32>
    %23 = arith.subf %22, %21 : vector<8x128xf32>
    %cst_10 = arith.constant 0.222222224 : f32
    %24 = vector.broadcast %cst_10 : f32 to vector<8x128xf32>
    %25 = arith.mulf %23, %24 : vector<8x128xf32>
    %26 = math.exp %25 : vector<8x128xf32>
    %cst_11 = arith.constant 0.265961528 : f32
    %27 = vector.broadcast %cst_11 : f32 to vector<8x128xf32>
    %28 = arith.mulf %27, %26 : vector<8x128xf32>
    %cst_12 = arith.constant 0.471404523 : f32
    %29 = vector.broadcast %cst_12 : f32 to vector<8x128xf32>
    %30 = arith.mulf %0, %29 : vector<8x128xf32>
    %31 = arith.mulf %30, %30 : vector<8x128xf32>
    %32 = arith.mulf %28, %9 : vector<8x128xf32>
    %c0_13 = arith.constant 0 : index
    %c0_14 = arith.constant 0 : index
    %c0_15 = arith.constant 0 : index
    %33 = vector.load %arg3[%c0_13, %c0_14, %c0_15] : memref<9x8x128xf32, #tpu.memory_space<vmem>>, vector<1x8x128xf32>
    %34 = vector.shape_cast %33 : vector<1x8x128xf32> to vector<8x128xf32>
    %35 = vector.shape_cast %32 : vector<8x128xf32> to vector<1x8x128xf32>
    tpu.vector_store %arg3[%c0_13, %c0_14, %c0_15], %35 {strides = array<i32>} : memref<9x8x128xf32, #tpu.memory_space<vmem>>, vector<1x8x128xf32>,
    %36 = arith.mulf %28, %15 : vector<8x128xf32>
    %c1 = arith.constant 1 : index
    %c0_16 = arith.constant 0 : index
    %c0_17 = arith.constant 0 : index
    %37 = vector.load %arg3[%c1, %c0_16, %c0_17] : memref<9x8x128xf32, #tpu.memory_space<vmem>>, vector<1x8x128xf32>
    %38 = vector.shape_cast %37 : vector<1x8x128xf32> to vector<8x128xf32>
    %39 = vector.shape_cast %36 : vector<8x128xf32> to vector<1x8x128xf32>
    tpu.vector_store %arg3[%c1, %c0_16, %c0_17], %39 {strides = array<i32>} : memref<9x8x128xf32, #tpu.memory_space<vmem>>, vector<1x8x128xf32>,
    %40 = arith.mulf %28, %20 : vector<8x128xf32>
    %c2 = arith.constant 2 : index
    %c0_18 = arith.constant 0 : index
    %c0_19 = arith.constant 0 : index
    %41 = vector.load %arg3[%c2, %c0_18, %c0_19] : memref<9x8x128xf32, #tpu.memory_space<vmem>>, vector<1x8x128xf32>
    %42 = vector.shape_cast %41 : vector<1x8x128xf32> to vector<8x128xf32>
    %43 = vector.shape_cast %40 : vector<8x128xf32> to vector<1x8x128xf32>
    tpu.vector_store %arg3[%c2, %c0_18, %c0_19], %43 {strides = array<i32>} : memref<9x8x128xf32, #tpu.memory_space<vmem>>, vector<1x8x128xf32>,
    %cst_20 = arith.constant -1.63299322 : f32
    %44 = vector.broadcast %cst_20 : f32 to vector<8x128xf32>
    %45 = arith.mulf %44, %30 : vector<8x128xf32>
    %46 = arith.mulf %45, %28 : vector<8x128xf32>
    %47 = arith.mulf %46, %9 : vector<8x128xf32>
    %c3 = arith.constant 3 : index
    %c0_21 = arith.constant 0 : index
    %c0_22 = arith.constant 0 : index
    %48 = vector.load %arg3[%c3, %c0_21, %c0_22] : memref<9x8x128xf32, #tpu.memory_space<vmem>>, vector<1x8x128xf32>
    %49 = vector.shape_cast %48 : vector<1x8x128xf32> to vector<8x128xf32>
    %50 = vector.shape_cast %47 : vector<8x128xf32> to vector<1x8x128xf32>
    tpu.vector_store %arg3[%c3, %c0_21, %c0_22], %50 {strides = array<i32>} : memref<9x8x128xf32, #tpu.memory_space<vmem>>, vector<1x8x128xf32>,
    %51 = arith.mulf %46, %15 : vector<8x128xf32>
    %c4 = arith.constant 4 : index
    %c0_23 = arith.constant 0 : index
    %c0_24 = arith.constant 0 : index
    %52 = vector.load %arg3[%c4, %c0_23, %c0_24] : memref<9x8x128xf32, #tpu.memory_space<vmem>>, vector<1x8x128xf32>
    %53 = vector.shape_cast %52 : vector<1x8x128xf32> to vector<8x128xf32>
    %54 = vector.shape_cast %51 : vector<8x128xf32> to vector<1x8x128xf32>
    tpu.vector_store %arg3[%c4, %c0_23, %c0_24], %54 {strides = array<i32>} : memref<9x8x128xf32, #tpu.memory_space<vmem>>, vector<1x8x128xf32>,
    %55 = arith.mulf %46, %20 : vector<8x128xf32>
    %c5 = arith.constant 5 : index
    %c0_25 = arith.constant 0 : index
    %c0_26 = arith.constant 0 : index
    %56 = vector.load %arg3[%c5, %c0_25, %c0_26] : memref<9x8x128xf32, #tpu.memory_space<vmem>>, vector<1x8x128xf32>
    %57 = vector.shape_cast %56 : vector<1x8x128xf32> to vector<8x128xf32>
    %58 = vector.shape_cast %55 : vector<8x128xf32> to vector<1x8x128xf32>
    tpu.vector_store %arg3[%c5, %c0_25, %c0_26], %58 {strides = array<i32>} : memref<9x8x128xf32, #tpu.memory_space<vmem>>, vector<1x8x128xf32>,
    %cst_27 = arith.constant 2.66666675 : f32
    %59 = vector.broadcast %cst_27 : f32 to vector<8x128xf32>
    %60 = arith.mulf %59, %31 : vector<8x128xf32>
    %cst_28 = arith.constant 1.33333337 : f32
    %61 = vector.broadcast %cst_28 : f32 to vector<8x128xf32>
    %62 = arith.subf %60, %61 : vector<8x128xf32>
    %63 = arith.mulf %62, %28 : vector<8x128xf32>
    %64 = arith.mulf %63, %9 : vector<8x128xf32>
    %c6 = arith.constant 6 : index
    %c0_29 = arith.constant 0 : index
    %c0_30 = arith.constant 0 : index
    %65 = vector.load %arg3[%c6, %c0_29, %c0_30] : memref<9x8x128xf32, #tpu.memory_space<vmem>>, vector<1x8x128xf32>
    %66 = vector.shape_cast %65 : vector<1x8x128xf32> to vector<8x128xf32>
    %67 = vector.shape_cast %64 : vector<8x128xf32> to vector<1x8x128xf32>
    tpu.vector_store %arg3[%c6, %c0_29, %c0_30], %67 {strides = array<i32>} : memref<9x8x128xf32, #tpu.memory_space<vmem>>, vector<1x8x128xf32>,
    %68 = arith.mulf %63, %15 : vector<8x128xf32>
    %c7 = arith.constant 7 : index
    %c0_31 = arith.constant 0 : index
    %c0_32 = arith.constant 0 : index
    %69 = vector.load %arg3[%c7, %c0_31, %c0_32] : memref<9x8x128xf32, #tpu.memory_space<vmem>>, vector<1x8x128xf32>
    %70 = vector.shape_cast %69 : vector<1x8x128xf32> to vector<8x128xf32>
    %71 = vector.shape_cast %68 : vector<8x128xf32> to vector<1x8x128xf32>
    tpu.vector_store %arg3[%c7, %c0_31, %c0_32], %71 {strides = array<i32>} : memref<9x8x128xf32, #tpu.memory_space<vmem>>, vector<1x8x128xf32>,
    %72 = arith.mulf %63, %20 : vector<8x128xf32>
    %c8 = arith.constant 8 : index
    %c0_33 = arith.constant 0 : index
    %c0_34 = arith.constant 0 : index
    %73 = vector.load %arg3[%c8, %c0_33, %c0_34] : memref<9x8x128xf32, #tpu.memory_space<vmem>>, vector<1x8x128xf32>
    %74 = vector.shape_cast %73 : vector<1x8x128xf32> to vector<8x128xf32>
    %75 = vector.shape_cast %72 : vector<8x128xf32> to vector<1x8x128xf32>
    tpu.vector_store %arg3[%c8, %c0_33, %c0_34], %75 {strides = array<i32>} : memref<9x8x128xf32, #tpu.memory_space<vmem>>, vector<1x8x128xf32>,
    return
  }
  func.func @transform_0(%arg0: i32) -> (i32, i32) {
    %c0_i32 = arith.constant 0 : i32
    %c0_i32_0 = arith.constant 0 : i32
    return %arg0, %c0_i32 : i32, i32
  }
  func.func @transform_1(%arg0: i32) -> (i32, i32) {
    %c0_i32 = arith.constant 0 : i32
    %c0_i32_0 = arith.constant 0 : i32
    return %arg0, %c0_i32 : i32, i32
  }
  func.func @transform_2(%arg0: i32) -> (i32, i32, i32) {
    %c0_i32 = arith.constant 0 : i32
    %c0_i32_0 = arith.constant 0 : i32
    %c0_i32_1 = arith.constant 0 : i32
    return %c0_i32, %arg0, %c0_i32_0 : i32, i32, i32
  }
}

</mosaic_0001>

<llo_original>
// kernel: tpu_custom_call.1
$region0: #{tpu_custom_call.1}
  #allocation0 [shape = 'u32[]', space=smem, size = 0x4, offset = 0x4, fixed_abs, tag = 'smem constant byte address 0x4 - core index']
  #allocation1 [shape = 'u32[144,128]{1,0:T(1,128)}', space=vmem, size = 0x12000, scoped, tag = 'internal scratch']
  %s0 = inlined_call_operand.hbm [shape: f32[8,128], index: 0, kind: input, shape index: {}]
  %s1 = inlined_call_operand.hbm [shape: f32[8,128], index: 1, kind: input, shape index: {}]
  %s2 = inlined_call_operand.hbm [shape: f32[9,8,128], index: 2, kind: output, shape index: {}]
  %s3 = sld [smem:[#allocation0]]
  $region26: #{tpu_custom_call.1} parent=0
    _
  %s5 = ssub.s32 1, %s3
  %s6 = scalar_select 0, %s5, %s3
  $region1: #{tpu_custom_call.1} parent=0
    #allocation2 [shape = 'u8[4096]{0}', space=vmem, size = 0x1000, scoped, tag = 'input window, operand 0, single buffered']
    #allocation3 [shape = 's32[1]{0}', space=sflag, size = 0x4, scoped, tag = 'scoped memory for tpu_custom_call.1']
    #allocation4 [shape = 's32[1]{0}', space=sflag, size = 0x4, scoped, tag = 'scoped memory for tpu_custom_call.1']
    #allocation5 [shape = 'u8[4096]{0}', space=vmem, size = 0x1000, scoped, tag = 'input window, operand 1, single buffered']
    #allocation6 [shape = 's32[1]{0}', space=sflag, size = 0x4, scoped, tag = 'scoped memory for tpu_custom_call.1']
    #allocation7 [shape = 'u8[36864]{0}', space=vmem, size = 0x9000, scoped, tag = 'output window, operand 0, single buffered']
    %7 = vsyncpa [#allocation3], 0
    %8 = vsyncpa [#allocation6], 0
    %9 = vsyncpa [#allocation4], 0
    // Predicated region
    $region2: #{tpu_custom_call.1} parent=1 // pred_check
      _
    $region3: #{tpu_custom_call.1} parent=1 // pred_check_branch
      %11 = sbr.rel (0) target = $region5
    $region4: #{tpu_custom_call.1} parent=1 // pred_region
      %s13 = ssub.s32 128, 128
      %14 = vsyncadd [#allocation3], %s13
      %s16 = sshll.u32 [#allocation2], 4
      %s17 = int_to_ptr.vmem [resolvable:$true] %s16
      %19 = dma.hbm_to_vmem [thread:$0]  %s0, 128, %s17, [#allocation3]
    $region5: #{tpu_custom_call.1} parent=1 // pred_fallthru
      _
    // Predicated region
    $region6: #{tpu_custom_call.1} parent=1 // pred_check
      _
    $region7: #{tpu_custom_call.1} parent=1 // pred_check_branch
      %21 = sbr.rel (0) target = $region9
    $region8: #{tpu_custom_call.1} parent=1 // pred_region
      %s23 = ssub.s32 128, 128
      %24 = vsyncadd [#allocation6], %s23
      %s26 = sshll.u32 [#allocation5], 4
      %s27 = int_to_ptr.vmem [resolvable:$true] %s26
      %29 = dma.hbm_to_vmem [thread:$0]  %s1, 128, %s27, [#allocation6]
    $region9: #{tpu_custom_call.1} parent=1 // pred_fallthru
      _
    // Predicated region
    $region10: #{tpu_custom_call.1} parent=1 // pred_check
      _
    $region11: #{tpu_custom_call.1} parent=1 // pred_check_branch
      %31 = sbr.rel (0) target = $region13
    $region12: #{tpu_custom_call.1} parent=1 // pred_region
      %32 = dma.done [#allocation3], 128
    $region13: #{tpu_custom_call.1} parent=1 // pred_fallthru
      _
    // Predicated region
    $region14: #{tpu_custom_call.1} parent=1 // pred_check
      _
    $region15: #{tpu_custom_call.1} parent=1 // pred_check_branch
      %34 = sbr.rel (0) target = $region17
    $region16: #{tpu_custom_call.1} parent=1 // pred_region
      %35 = dma.done [#allocation6], 128
    $region17: #{tpu_custom_call.1} parent=1 // pred_fallthru
      _
    %v36 = vld [vmem:[#allocation2] sm:$0xff]
    %v37 = vld [vmem:[#allocation5] sm:$0xff]
    %v38 = vmul.f32 %v37, %v37
    %v39 = vsub.f32 0.0, %v38
    %v40 = vmul.f32 %v39, 0.22222222
    %v41 = vmul.f32 %v40, 1.442695
    %v42 = vpow.pop %v41
    %v43 = vmul.f32 %v42, 0.26596153
    %v44 = vmul.f32 %v37, 0.47140452
    %v45 = vmul.f32 %v44, %v44
    %v46 = vmul.f32 %v44, -1.6329932
    %v47 = vmul.f32 %v46, %v43
    %v48 = vmul.f32 %v45, 2.6666667
    %v49 = vsub.f32 %v48, 1.3333334
    %v50 = vmul.f32 %v49, %v43
    %v51 = vmul.f32 %v36, %v36
    %v52 = vsub.f32 0.0, %v51
    %v53 = vmul.f32 %v52, 0.22222222
    %v54 = vmul.f32 %v53, 1.442695
    %v55 = vpow.pop %v54
    %v56 = vmul.f32 %v55, 0.26596153
    %v57 = vmul.f32 %v36, 0.47140452
    %v58 = vmul.f32 %v57, %v57
    %v59 = vmul.f32 %v56, %v43
    %60 = vst [vmem:[#allocation7] sm:$0xff] %v59
    %v61 = vmul.f32 %v56, %v47
    %s62 = scalar_lea.vmem [#allocation7], 8
    %63 = vst [vmem:[%s62] sm:$0xff] %v61
    %v64 = vmul.f32 %v56, %v50
    %s65 = scalar_lea.vmem [#allocation7], 16
    %66 = vst [vmem:[%s65] sm:$0xff] %v64
    %v67 = vmul.f32 %v57, -1.6329932
    %v68 = vmul.f32 %v67, %v56
    %v69 = vmul.f32 %v68, %v43
    %s70 = scalar_lea.vmem [#allocation7], 24
    %71 = vst [vmem:[%s70] sm:$0xff] %v69
    %v72 = vmul.f32 %v68, %v47
    %s73 = scalar_lea.vmem [#allocation7], 32
    %74 = vst [vmem:[%s73] sm:$0xff] %v72
    %v75 = vmul.f32 %v68, %v50
    %s76 = scalar_lea.vmem [#allocation7], 40
    %77 = vst [vmem:[%s76] sm:$0xff] %v75
    %v78 = vmul.f32 %v58, 2.6666667
    %v79 = vsub.f32 %v78, 1.3333334
    %v80 = vmul.f32 %v79, %v56
    %v81 = vmul.f32 %v80, %v43
    %s82 = scalar_lea.vmem [#allocation7], 48
    %83 = vst [vmem:[%s82] sm:$0xff] %v81
    %v84 = vmul.f32 %v80, %v47
    %s85 = scalar_lea.vmem [#allocation7], 56
    %86 = vst [vmem:[%s85] sm:$0xff] %v84
    %v87 = vmul.f32 %v80, %v50
    %s88 = scalar_lea.vmem [#allocation7], 64
    %89 = vst [vmem:[%s88] sm:$0xff] %v87
    // Predicated region
    $region18: #{tpu_custom_call.1} parent=1 // pred_check
      _
    $region19: #{tpu_custom_call.1} parent=1 // pred_check_branch
      %91 = sbr.rel (0) target = $region21
    $region20: #{tpu_custom_call.1} parent=1 // pred_region
      %s93 = ssub.s32 1152, 1152
      %94 = vsyncadd [#allocation4], %s93
      %s95 = sshll.u32 [#allocation7], 4
      %s96 = int_to_ptr.vmem [resolvable:$true] %s95
      %101 = dma.vmem_to_hbm [thread:$0]  %s96, 1152, %s2, [#allocation4], 128, 128, 8
    $region21: #{tpu_custom_call.1} parent=1 // pred_fallthru
      _
    // Predicated region
    $region22: #{tpu_custom_call.1} parent=1 // pred_check
      _
    $region23: #{tpu_custom_call.1} parent=1 // pred_check_branch
      %103 = sbr.rel (0) target = $region25
    $region24: #{tpu_custom_call.1} parent=1 // pred_region
      %104 = dma.done [#allocation4], 1152
    $region25: #{tpu_custom_call.1} parent=1 // pred_fallthru
      _
    %105 = vsyncpa [#allocation3], 1
    %106 = vsyncpa [#allocation6], 1
    %107 = vsyncpa [#allocation4], 1

</llo_original>
